<compile_context>
chip_gen: v7x
topology: tpu7x:2x2x1
jax: 0.10.0
libtpu: 0.0.40
codegen_flags: <defaults>
</compile_context>

<pallas_src>
import functools
import math

import jax
import jax.numpy as jnp
from jax import lax
from jax.experimental import pallas as pl
from jax.experimental.pallas import tpu as pltpu


# ---------------------------------------------------------------------------
# Kernel 1: dense (block-diagonal) linear projection, tiled over rows.
# ---------------------------------------------------------------------------
def _dense_linear_kernel(x_ref, w_ref, b_ref, o_ref):
    # x_ref: (TM, C_in)   w_ref: (C_in, C_out)   b_ref: (1, C_out)
    out = jnp.dot(x_ref[...], w_ref[...], preferred_element_type=jnp.float32)
    o_ref[...] = (out + b_ref[...]).astype(o_ref.dtype)


def dense_linear(x2, w, b, *, row_tile=512):
    """x2: [R, C_in], w: [C_in, C_out], b: [C_out] -> [R, C_out]."""
    R, c_in = x2.shape
    c_out = w.shape[1]
    tm = R if R <= row_tile else row_tile        # row_tile is a multiple of 8
    grid = (pl.cdiv(R, tm),)
    b2 = b.reshape(1, c_out)
    return pl.pallas_call(
        _dense_linear_kernel,
        out_shape=jax.ShapeDtypeStruct((R, c_out), x2.dtype),
        grid=grid,
        in_specs=[
            pl.BlockSpec((tm, c_in), lambda i: (i, 0)),
            pl.BlockSpec((c_in, c_out), lambda i: (0, 0)),
            pl.BlockSpec((1, c_out), lambda i: (0, 0)),
        ],
        out_specs=pl.BlockSpec((tm, c_out), lambda i: (i, 0)),
        compiler_params=pltpu.CompilerParams(dimension_semantics=("parallel",)),
    )(x2, w, b2)


# ---------------------------------------------------------------------------
# Kernel 2: multi-head attention with restricted softmax.
#   All heads of one (batch, q-tile) block are handled in a single grid step.
# ---------------------------------------------------------------------------
def _attention_kernel(q_ref, k_ref, v_ref, o_ref, *, heads, head_dim):
    # q_ref: (1, TQ, C)   k_ref/v_ref: (1, Sk, C)   o_ref: (1, TQ, C)
    inv_sqrt_d = jnp.float32(1.0 / math.sqrt(head_dim))
    for h in range(heads):                       # static unroll over heads
        lo = h * head_dim
        q = q_ref[0, :, lo:lo + head_dim].astype(jnp.float32) * inv_sqrt_d
        k = k_ref[0, :, lo:lo + head_dim].astype(jnp.float32)
        v = v_ref[0, :, lo:lo + head_dim].astype(jnp.float32)
        # Contract the last dims directly -> no transposed copy of k in VMEM.
        score = lax.dot_general(q, k, (((1,), (1,)), ((), ())),
                                preferred_element_type=jnp.float32)   # (TQ, Sk)
        # restricted_softmax with margin = 0
        src_max = jnp.maximum(jnp.max(score, axis=-1, keepdims=True), 0.0)
        e = jnp.exp(score - src_max)
        denom = jnp.sum(e, axis=-1, keepdims=True) + jnp.exp(-src_max)
        attn = e * pl.reciprocal(denom)          # exact reciprocal (approx=False)
        # TODO(synk): dropout on `attn` not implemented (module runs with dropout=0).
        out = jnp.dot(attn, v, preferred_element_type=jnp.float32)    # (TQ, D)
        o_ref[0, :, lo:lo + head_dim] = out.astype(o_ref.dtype)


def multihead_attention(q, k, v, *, heads, q_tile=512):
    """q: [B, Sq, C], k/v: [B, Sk, C] -> [B, Sq, C]; C = heads * head_dim."""
    B, Sq, C = q.shape
    Sk = k.shape[1]
    head_dim = C // heads
    tq = Sq if Sq <= q_tile else q_tile
    kernel = functools.partial(_attention_kernel, heads=heads, head_dim=head_dim)
    # TODO(synk): for very long Sk, add an online-softmax (flash) grid axis over
    # Sk so the (TQ, Sk) f32 score tile never exceeds VMEM (relevant on v7x).
    return pl.pallas_call(
        kernel,
        out_shape=jax.ShapeDtypeStruct((B, Sq, C), q.dtype),
        grid=(B, pl.cdiv(Sq, tq)),
        in_specs=[
            pl.BlockSpec((1, tq, C), lambda b, i: (b, i, 0)),
            pl.BlockSpec((1, Sk, C), lambda b, i: (b, 0, 0)),
            pl.BlockSpec((1, Sk, C), lambda b, i: (b, 0, 0)),
        ],
        out_specs=pl.BlockSpec((1, tq, C), lambda b, i: (b, i, 0)),
        compiler_params=pltpu.CompilerParams(
            dimension_semantics=("parallel", "parallel")),
    )(q, k, v)


# ---------------------------------------------------------------------------
# MultiHead module (parameters + forward glue)
# ---------------------------------------------------------------------------
def _block_diagonal(w):
    """Grouped weight [G, Cin_g, Cout_g] -> dense block-diagonal [Cin, Cout]."""
    G, cin_g, cout_g = w.shape
    eye = jnp.eye(G, dtype=w.dtype)
    dense = jnp.einsum("gij,gh->gihj", w, eye)
    return dense.reshape(G * cin_g, G * cout_g)


class MultiHead:
    def __init__(self, in_channels, out_channels, heads=1, groups=1,
                 dropout=0.0, bias=True, key=None):
        assert in_channels % heads == 0 and out_channels % heads == 0
        assert in_channels % groups == 0 and out_channels % groups == 0
        assert max(groups, heads) % min(groups, heads) == 0
        self.in_channels = in_channels
        self.out_channels = out_channels
        self.heads = heads
        self.groups = groups
        self.dropout = dropout

        cin_g = in_channels // groups
        cout_g = out_channels // groups
        # kaiming_uniform(fan=cin_g, a=sqrt(5)) -> U(-1/sqrt(fan), 1/sqrt(fan));
        # same bound for bias (uniform(cin_g, bias)).
        bound = 1.0 / math.sqrt(cin_g)
        keys = jax.random.split(key, 6)

        def wmat(k):
            return jax.random.uniform(k, (groups, cin_g, cout_g),
                                      jnp.float32, -bound, bound)

        def bvec(k):
            return jax.random.uniform(k, (out_channels,),
                                      jnp.float32, -bound, bound)

        self.wq, self.bq = wmat(keys[0]), bvec(keys[1])
        self.wk, self.bk = wmat(keys[2]), bvec(keys[3])
        self.wv, self.bv = wmat(keys[4]), bvec(keys[5])

        # One-time expansion of the tiny grouped weights to lane-dense
        # block-diagonal form so the projection is a single dense matmul with
        # C_out on lanes (wastes G x flops on zeros, but removes masked stores,
        # the HBM group-transposes, and the per-group grid).
        self.wq_dense = _block_diagonal(self.wq)
        self.wk_dense = _block_diagonal(self.wk)
        self.wv_dense = _block_diagonal(self.wv)

    def __call__(self, query, key, value):
        assert query.ndim == key.ndim == value.ndim >= 2
        assert query.shape[-1] == key.shape[-1] == value.shape[-1]
        assert key.shape[-2] == value.shape[-2]

        lead = query.shape[:-2]
        Sq, Sk = query.shape[-2], key.shape[-2]
        B = math.prod(lead) if lead else 1
        C_in, C_out = self.in_channels, self.out_channels

        # Projections on flattened rows (free reshapes, no HBM transposes).
        q = dense_linear(query.reshape(-1, C_in), self.wq_dense, self.bq)
        k = dense_linear(key.reshape(-1, C_in), self.wk_dense, self.bk)
        v = dense_linear(value.reshape(-1, C_in), self.wv_dense, self.bv)

        # Keep channels-last layout; heads are sliced on lanes inside the
        # attention kernel (no swapaxes / [B,H,S,D] transpose in HBM).
        q = q.reshape(B, Sq, C_out)
        k = k.reshape(B, Sk, C_out)
        v = v.reshape(B, Sk, C_out)

        out = multihead_attention(q, k, v, heads=self.heads)   # [B, Sq, C_out]
        return out.reshape(*lead, Sq, C_out)


# ---------------------------------------------------------------------------
# Pure-JAX reference (grouped math, faithful to the PyTorch module)
# ---------------------------------------------------------------------------
def _ref_grouped_linear(x, w, b):
    G, cin_g, cout_g = w.shape
    lead = x.shape[:-1]
    N = math.prod(lead) if lead else 1
    xg = x.reshape(N, G, cin_g).transpose(1, 0, 2)
    out = jnp.einsum("gnc,gcd->gnd", xg, w).transpose(1, 0, 2)
    return out.reshape(*lead, G * cout_g) + b


def _ref_forward(mh, query, key, value):
    q = _ref_grouped_linear(query, mh.wq, mh.bq)
    k = _ref_grouped_linear(key, mh.wk, mh.bk)
    v = _ref_grouped_linear(value, mh.wv, mh.bv)
    size = q.shape[:-2]
    Sq, Sk = q.shape[-2], k.shape[-2]
    H = mh.heads
    D = mh.out_channels // H
    qh = q.reshape(*size, Sq, H, D).swapaxes(-2, -3)
    kh = k.reshape(*size, Sk, H, D).swapaxes(-2, -3)
    vh = v.reshape(*size, Sk, H, D).swapaxes(-2, -3)
    score = jnp.einsum("...qd,...kd->...qk", qh, kh) / math.sqrt(D)
    src_max = jnp.maximum(jnp.max(score, axis=-1, keepdims=True), 0.0)
    e = jnp.exp(score - src_max)
    attn = e / (jnp.sum(e, axis=-1, keepdims=True) + jnp.exp(-src_max))
    out = jnp.einsum("...qk,...kd->...qd", attn, vh)
    return out.swapaxes(-3, -2).reshape(*size, Sq, mh.out_channels)


if __name__ == "__main__":
    rng = jax.random.PRNGKey(0)
    k_param, k_q, k_k, k_v = jax.random.split(rng, 4)

    B, Sq, Sk = 2, 8, 8
    in_channels, out_channels, heads, groups = 16, 16, 2, 2

    mh = MultiHead(in_channels, out_channels, heads=heads, groups=groups,
                   dropout=0.0, bias=True, key=k_param)

    query = jax.random.normal(k_q, (B, Sq, in_channels), jnp.float32)
    key = jax.random.normal(k_k, (B, Sk, in_channels), jnp.float32)
    value = jax.random.normal(k_v, (B, Sk, in_channels), jnp.float32)

    out = mh(query, key, value)
    out = jax.block_until_ready(out)

    ref = _ref_forward(mh, query, key, value)
    assert out.shape == (B, Sq, out_channels)
    assert jnp.allclose(out, ref, rtol=1e-5, atol=1e-5), "mismatch vs reference"

    print("KERNEL_OK")
</pallas_src>

<mosaic_0001>
module attributes {stable_mosaic.version = 11 : i64} {
  func.func @_dense_linear_kernel(%arg0: i32, %arg1: memref<16x16xf32, #tpu.memory_space<vmem>>, %arg2: memref<16x16xf32, #tpu.memory_space<vmem>>, %arg3: memref<1x16xf32, #tpu.memory_space<vmem>>, %arg4: memref<16x16xf32, #tpu.memory_space<vmem>>) attributes {dimension_semantics = [#tpu.dimension_semantics<parallel>], iteration_bounds = array<i64: 1>, scalar_prefetch = 0 : i64, scratch_operands = 0 : i64, tpu.core_type = #tpu.core_type<tc>, window_params = [{transform_indices = @transform_0, window_bounds = array<i64: 16, 16>}, {pipeline_mode = #tpu.pipeline_mode<synchronous>, transform_indices = @transform_1, window_bounds = array<i64: 16, 16>}, {pipeline_mode = #tpu.pipeline_mode<synchronous>, transform_indices = @transform_2, window_bounds = array<i64: 1, 16>}, {transform_indices = @transform_3, window_bounds = array<i64: 16, 16>}]} {
    %c0 = arith.constant 0 : index
    %c0_0 = arith.constant 0 : index
    %0 = vector.load %arg1[%c0, %c0_0] : memref<16x16xf32, #tpu.memory_space<vmem>>, vector<16x16xf32>
    %c0_1 = arith.constant 0 : index
    %c0_2 = arith.constant 0 : index
    %1 = vector.load %arg2[%c0_1, %c0_2] : memref<16x16xf32, #tpu.memory_space<vmem>>, vector<16x16xf32>
    %cst = arith.constant dense<0.000000e+00> : vector<16x16xf32>
    %2 = tpu.matmul %0, %1, %cst {dimension_numbers = #tpu.dot_dimension_numbers<[1], [0], [0], [1], [0, 0, 1, 1], [], []>} : vector<16x16xf32>, vector<16x16xf32>, vector<16x16xf32> -> vector<16x16xf32>
    %c0_3 = arith.constant 0 : index
    %c0_4 = arith.constant 0 : index
    %3 = vector.load %arg3[%c0_3, %c0_4] : memref<1x16xf32, #tpu.memory_space<vmem>>, vector<1x16xf32>
    %4 = vector.broadcast %3 : vector<1x16xf32> to vector<16x16xf32>
    %5 = arith.addf %2, %4 : vector<16x16xf32>
    %c0_5 = arith.constant 0 : index
    %c0_6 = arith.constant 0 : index
    %6 = vector.load %arg4[%c0_5, %c0_6] : memref<16x16xf32, #tpu.memory_space<vmem>>, vector<16x16xf32>
    tpu.vector_store %arg4[%c0_5, %c0_6], %5 {strides = array<i32>} : memref<16x16xf32, #tpu.memory_space<vmem>>, vector<16x16xf32>,
    return
  }
  func.func @transform_0(%arg0: i32) -> (i32, i32) {
    %c0_i32 = arith.constant 0 : i32
    %c0_i32_0 = arith.constant 0 : i32
    return %arg0, %c0_i32 : i32, i32
  }
  func.func @transform_1(%arg0: i32) -> (i32, i32) {
    %c0_i32 = arith.constant 0 : i32
    %c0_i32_0 = arith.constant 0 : i32
    %c0_i32_1 = arith.constant 0 : i32
    return %c0_i32, %c0_i32_0 : i32, i32
  }
  func.func @transform_2(%arg0: i32) -> (i32, i32) {
    %c0_i32 = arith.constant 0 : i32
    %c0_i32_0 = arith.constant 0 : i32
    %c0_i32_1 = arith.constant 0 : i32
    return %c0_i32, %c0_i32_0 : i32, i32
  }
  func.func @transform_3(%arg0: i32) -> (i32, i32) {
    %c0_i32 = arith.constant 0 : i32
    %c0_i32_0 = arith.constant 0 : i32
    return %arg0, %c0_i32 : i32, i32
  }
}

</mosaic_0001>

<llo_original>
// kernel: tpu_custom_call.1
$region0: #{tpu_custom_call.1}
  #allocation0 [shape = 'u32[]', space=smem, size = 0x4, offset = 0x4, fixed_abs, tag = 'smem constant byte address 0x4 - core index']
  #allocation1 [shape = 'u32[144,128]{1,0:T(1,128)}', space=vmem, size = 0x12000, scoped, tag = 'internal scratch']
  %s0 = inlined_call_operand.hbm [shape: f32[16,16], index: 0, kind: input, shape index: {}]
  %s1 = inlined_call_operand.hbm [shape: f32[16,16], index: 1, kind: input, shape index: {}]
  %s2 = inlined_call_operand.vmem [shape: f32[1,16], index: 2, kind: input, shape index: {}]
  %s3 = inlined_call_operand.hbm [shape: f32[16,16], index: 3, kind: output, shape index: {}]
  %s4 = sld [smem:[#allocation0]]
  $region30: #{tpu_custom_call.1} parent=0
    _
  %s6 = ssub.s32 1, %s4
  %s7 = scalar_select 0, %s6, %s4
  $region1: #{tpu_custom_call.1} parent=0
    #allocation2 [shape = 'u8[8192]{0}', space=vmem, size = 0x2000, scoped, tag = 'input window, operand 0, single buffered']
    #allocation3 [shape = 's32[1]{0}', space=sflag, size = 0x4, scoped, tag = 'scoped memory for tpu_custom_call.1']
    #allocation4 [shape = 's32[1]{0}', space=sflag, size = 0x4, scoped, tag = 'scoped memory for tpu_custom_call.1']
    #allocation5 [shape = 'u8[8192]{0}', space=vmem, size = 0x2000, scoped, tag = 'input window, operand 1, single buffered']
    #allocation6 [shape = 's32[1]{0}', space=sflag, size = 0x4, scoped, tag = 'scoped memory for tpu_custom_call.1']
    #allocation7 [shape = 'u8[8192]{0}', space=vmem, size = 0x2000, scoped, tag = 'output window, operand 0, single buffered']
    %8 = vsyncpa [#allocation3], 0
    %9 = vsyncpa [#allocation6], 0
    %10 = vsyncpa [#allocation4], 0
    // Predicated region
    $region2: #{tpu_custom_call.1} parent=1 // pred_check
      _
    $region3: #{tpu_custom_call.1} parent=1 // pred_check_branch
      %12 = sbr.rel (0) target = $region5
    $region4: #{tpu_custom_call.1} parent=1 // pred_region
      %s14 = ssub.s32 256, 256
      %15 = vsyncadd [#allocation3], %s14
      %s16 = sshll.u32 [#allocation2], 4
      %s17 = int_to_ptr.vmem [resolvable:$true] %s16
      %22 = dma.hbm_to_vmem [thread:$0]  %s0, 256, %s17, [#allocation3], 128, 128, 8
    $region5: #{tpu_custom_call.1} parent=1 // pred_fallthru
      _
    // Predicated region
    $region6: #{tpu_custom_call.1} parent=1 // pred_check
      _
    $region7: #{tpu_custom_call.1} parent=1 // pred_check_branch
      %24 = sbr.rel (0) target = $region9
    $region8: #{tpu_custom_call.1} parent=1 // pred_region
      %s26 = ssub.s32 256, 256
      %27 = vsyncadd [#allocation6], %s26
      %s28 = sshll.u32 [#allocation5], 4
      %s29 = int_to_ptr.vmem [resolvable:$true] %s28
      %34 = dma.hbm_to_vmem [thread:$0]  %s1, 256, %s29, [#allocation6], 128, 128, 8
    $region9: #{tpu_custom_call.1} parent=1 // pred_fallthru
      _
    // Predicated region
    $region10: #{tpu_custom_call.1} parent=1 // pred_check
      _
    $region11: #{tpu_custom_call.1} parent=1 // pred_check_branch
      %36 = sbr.rel (0) target = $region13
    $region12: #{tpu_custom_call.1} parent=1 // pred_region
      _
    $region13: #{tpu_custom_call.1} parent=1 // pred_fallthru
      _
    // Predicated region
    $region14: #{tpu_custom_call.1} parent=1 // pred_check
      _
    $region15: #{tpu_custom_call.1} parent=1 // pred_check_branch
      %38 = sbr.rel (0) target = $region17
    $region16: #{tpu_custom_call.1} parent=1 // pred_region
      %39 = dma.done [#allocation3], 256
    $region17: #{tpu_custom_call.1} parent=1 // pred_fallthru
      _
    // Predicated region
    $region18: #{tpu_custom_call.1} parent=1 // pred_check
      _
    $region19: #{tpu_custom_call.1} parent=1 // pred_check_branch
      %41 = sbr.rel (0) target = $region21
    $region20: #{tpu_custom_call.1} parent=1 // pred_region
      %42 = dma.done [#allocation6], 256
    $region21: #{tpu_custom_call.1} parent=1 // pred_fallthru
      _
    %v43 = vld [vmem:[#allocation2] sm:$0xff]
    %v44 = vld [vmem:[#allocation2 + $0x8] sm:$0xff]
    %v45 = vld [vmem:[#allocation5] sm:$0xff]
    %v46 = vld [vmem:[#allocation5 + $0x8] sm:$0xff]
    %v47 = vld [vmem:[%s2] sm:$0x1]
    %v49 = vlaneseq
    %v50 = vshrl.u32 %v49, 7
    %v51 = vsub.s32 0, %v50
    %v52 = vrot.slane %v47, %v51
    %vm54 = vcmask 130048
    %v56 = vsel %vm54, %v43, 0
    %v59 = vsel %vm54, %v44, 0
    %61 = vmatprep.subr.mxu0 0.0
    %62 = vmatpush1.msra.mxu0 %v45
    %63 = vmatprep.subr.mxu0 0.0
    %64 = vmatpush1.msra.mxu0 %v46
    %65 = vmatprep.subr.mxu0 0.0
    %66 = vmatpush1.msra.mxu0 0.0
    %67 = vmatprep.subr.mxu0 0.0
    %68 = vmatpush1.msra.mxu0 0.0
    %69 = vmatprep.subr.mxu0 0.0
    %70 = vmatpush1.msra.mxu0 0.0
    %71 = vmatprep.subr.mxu0 0.0
    %72 = vmatpush1.msra.mxu0 0.0
    %73 = vmatprep.subr.mxu0 0.0
    %74 = vmatpush1.msra.mxu0 0.0
    %75 = vmatprep.subr.mxu0 0.0
    %76 = vmatpush1.msra.mxu0 0.0
    %77 = vmatprep.subr.mxu0 0.0
    %78 = vmatpush1.msra.mxu0 0.0
    %79 = vmatprep.subr.mxu0 0.0
    %80 = vmatpush1.msra.mxu0 0.0
    %81 = vmatprep.subr.mxu0 0.0
    %82 = vmatpush1.msra.mxu0 0.0
    %83 = vmatprep.subr.mxu0 0.0
    %84 = vmatpush1.msra.mxu0 0.0
    %85 = vmatprep.subr.mxu0 0.0
    %86 = vmatpush1.msra.mxu0 0.0
    %87 = vmatprep.subr.mxu0 0.0
    %88 = vmatpush1.msra.mxu0 0.0
    %89 = vmatprep.subr.mxu0 0.0
    %90 = vmatpush1.msra.mxu0 0.0
    %91 = vmatprep.subr.mxu0 0.0
    %92 = vmatpush1.msra.mxu0 0.0
    %93 = vmatprep.subr.mxu0 0.0
    %94 = vmatpush1.msra.mxu0 0.0
    %95 = vmatprep.subr.mxu0 0.0
    %96 = vmatpush1.msra.mxu0 0.0
    %97 = vmatprep.subr.mxu0 0.0
    %98 = vmatpush1.msra.mxu0 0.0
    %99 = vmatprep.subr.mxu0 0.0
    %100 = vmatpush1.msra.mxu0 0.0
    %101 = vmatprep.subr.mxu0 0.0
    %102 = vmatpush1.msra.mxu0 0.0
    %103 = vmatprep.subr.mxu0 0.0
    %104 = vmatpush1.msra.mxu0 0.0
    %105 = vmatprep.subr.mxu0 0.0
    %106 = vmatpush1.msra.mxu0 0.0
    %107 = vmatprep.subr.mxu0 0.0
    %108 = vmatpush1.msra.mxu0 0.0
    %109 = vmatprep.subr.mxu0 0.0
    %110 = vmatpush1.msra.mxu0 0.0
    %111 = vmatprep.subr.mxu0 0.0
    %112 = vmatpush1.msra.mxu0 0.0
    %113 = vmatprep.subr.mxu0 0.0
    %114 = vmatpush1.msra.mxu0 0.0
    %115 = vmatprep.subr.mxu0 0.0
    %116 = vmatpush1.msra.mxu0 0.0
    %117 = vmatprep.subr.mxu0 0.0
    %118 = vmatpush1.msra.mxu0 0.0
    %119 = vmatprep.subr.mxu0 0.0
    %120 = vmatpush1.msra.mxu0 0.0
    %121 = vmatprep.subr.mxu0 0.0
    %122 = vmatpush1.msra.mxu0 0.0
    %123 = vmatprep.subr.mxu0 0.0
    %124 = vmatpush1.msra.mxu0 0.0
    %125 = vmatprep.mubr.f32.mxu0 0.0
    %126 = vmatmul.mubr.f32.gmra.mrb[0].mxu0 %v56
    %v127 = vpop.f32.mrb[0].mxu0
    %v128 = vadd.f32 %v52, %v127
    %v129 = vpop.f32.mrb[0].mxu0
    %130 = vmatprep.mubr.f32.mxu0 0.0
    %131 = vmatmul.mubr.f32.gmra.mrb[0].mxu0 %v59
    %v132 = vpop.f32.mrb[0].mxu0
    %v133 = vadd.f32 %v52, %v132
    %v134 = vpop.f32.mrb[0].mxu0
    %135 = vdwg.mxu0
    %136 = vst.msk [vmem:[#allocation7] sm:$0xff] %vm54, %v128
    %137 = vst.msk [vmem:[#allocation7 + $0x8] sm:$0xff] %vm54, %v133
    // Predicated region
    $region22: #{tpu_custom_call.1} parent=1 // pred_check
      _
    $region23: #{tpu_custom_call.1} parent=1 // pred_check_branch
      %139 = sbr.rel (0) target = $region25
    $region24: #{tpu_custom_call.1} parent=1 // pred_region
      %s141 = ssub.s32 256, 256
      %142 = vsyncadd [#allocation4], %s141
      %s143 = sshll.u32 [#allocation7], 4
      %s144 = int_to_ptr.vmem [resolvable:$true] %s143
      %149 = dma.vmem_to_hbm [thread:$0]  %s144, 256, %s3, [#allocation4], 128, 128, 8
    $region25: #{tpu_custom_call.1} parent=1 // pred_fallthru
      _
    // Predicated region
    $region26: #{tpu_custom_call.1} parent=1 // pred_check
      _
    $region27: #{tpu_custom_call.1} parent=1 // pred_check_branch
      %151 = sbr.rel (0) target = $region29
    $region28: #{tpu_custom_call.1} parent=1 // pred_region
      %152 = dma.done [#allocation4], 256
    $region29: #{tpu_custom_call.1} parent=1 // pred_fallthru
      _
    %153 = vsyncpa [#allocation3], 1
    %154 = vsyncpa [#allocation6], 1
    %155 = vsyncpa [#allocation4], 1

</llo_original>
